<compile_context>
chip_gen: v7x
topology: tpu7x:2x2x1
jax: 0.10.0
libtpu: 0.0.40
codegen_flags: <defaults>
</compile_context>

<pallas_src>
import functools

import jax
import jax.numpy as jnp
from jax import lax
from jax.experimental import pallas as pl
from jax.experimental.pallas import tpu as pltpu

LANE = 128
ACC_SUBLANE = 8                        # f32 accumulator sublanes
_TARGET_BLOCK_BYTES = 2 << 20          # ~2 MiB per input block
_VMEM_LIMIT_BYTES = 32 * 1024 * 1024   # explicit scoped-VMEM budget (all gens)


# ----------------------------- kernels ------------------------------------ #

def _l1_sum_kernel(pred_ref, tgt_ref, out_ref, acc_ref, *,
                   scale, valid_rows, block_rows, masked):
    """Accumulate partial sums of |pred - tgt| into an (8,128) scratch; emit (1,1)."""
    j = pl.program_id(0)

    @pl.when(j == 0)
    def _init():
        acc_ref[...] = jnp.zeros_like(acc_ref)
        out_ref[...] = jnp.zeros_like(out_ref)

    d = jnp.abs(pred_ref[...] - tgt_ref[...]).astype(jnp.float32)
    if masked:  # static: last grid block is ragged -> zero out OOB rows
        rid = lax.broadcasted_iota(jnp.int32, d.shape, 0) + j * block_rows
        d = jnp.where(rid < valid_rows, d, 0.0)
    # (block_rows,128) -> (block_rows//8, 8, 128); sum over leading axis is
    # pure vreg adds (VPU) into the resident accumulator.
    acc_ref[...] += d.reshape(-1, ACC_SUBLANE, LANE).sum(axis=0)

    @pl.when(j == pl.num_programs(0) - 1)
    def _fin():
        total = jnp.sum(acc_ref[...], axis=1, keepdims=True)   # (8,1)  XLU
        total = jnp.sum(total, axis=0, keepdims=True)           # (1,1)
        out_ref[...] = total * scale


def _l1_sum_w_kernel(pred_ref, tgt_ref, w_ref, out_ref, acc_ref, *,
                     scale, valid_rows, block_rows, masked):
    """Weighted variant of the partial-sum kernel."""
    j = pl.program_id(0)

    @pl.when(j == 0)
    def _init():
        acc_ref[...] = jnp.zeros_like(acc_ref)
        out_ref[...] = jnp.zeros_like(out_ref)

    d = jnp.abs(pred_ref[...] - tgt_ref[...]) * w_ref[...]   # native dtype
    d = d.astype(jnp.float32)
    if masked:
        rid = lax.broadcasted_iota(jnp.int32, d.shape, 0) + j * block_rows
        d = jnp.where(rid < valid_rows, d, 0.0)
    acc_ref[...] += d.reshape(-1, ACC_SUBLANE, LANE).sum(axis=0)

    @pl.when(j == pl.num_programs(0) - 1)
    def _fin():
        total = jnp.sum(acc_ref[...], axis=1, keepdims=True)
        total = jnp.sum(total, axis=0, keepdims=True)
        out_ref[...] = total * scale


def _l1_elem_kernel(pred_ref, tgt_ref, out_ref, *, loss_weight):
    """Elementwise loss_weight * |pred - tgt| (reduction='none', no weight)."""
    d = jnp.abs(pred_ref[...] - tgt_ref[...])
    if loss_weight != 1.0:
        d = d * loss_weight      # weak-typed Python float: stays in input dtype
    out_ref[...] = d.astype(out_ref.dtype)


def _l1_elem_w_kernel(pred_ref, tgt_ref, w_ref, out_ref, *, loss_weight):
    """Elementwise loss_weight * |pred - tgt| * weight (reduction='none')."""
    d = jnp.abs(pred_ref[...] - tgt_ref[...]) * w_ref[...]
    if loss_weight != 1.0:
        d = d * loss_weight
    out_ref[...] = d.astype(out_ref.dtype)


# ----------------------------- wrappers ------------------------------------ #

def _round_up(x, m):
    return (x + m - 1) // m * m


def _flatten_to_lanes(x):
    """Free-reshape to a lane-dense (rows, 128) slab; pad tail only if needed."""
    flat = x.reshape(-1)
    total = flat.shape[0]
    rem = total % LANE
    if rem:
        # Uncommon path: only pads to the next 128 multiple (single tail pad).
        flat = jnp.pad(flat, (0, LANE - rem))
    rows = flat.shape[0] // LANE
    return flat.reshape(rows, LANE), rows


def _pick_block_rows(rows, itemsize, block_bytes):
    """Block rows: ~block_bytes per input, rounded to the dtype sublane packing."""
    pack = max(ACC_SUBLANE, 32 // int(itemsize))   # 8 f32 / 16 bf16 / 32 int8
    target = max(pack, block_bytes // (LANE * int(itemsize)))
    return _round_up(min(rows, int(target)), pack)


def _l1_reduce(pred, target, weight, scale, block_bytes=_TARGET_BLOCK_BYTES):
    """Returns scale * sum(|pred - target| * weight) as a scalar."""
    pred2, rows = _flatten_to_lanes(pred)
    tgt2, _ = _flatten_to_lanes(target)
    args = [pred2, tgt2]

    block_rows = _pick_block_rows(rows, pred.dtype.itemsize, block_bytes)
    nblocks = pl.cdiv(rows, block_rows)
    masked = (rows % block_rows) != 0
    common = dict(scale=scale, valid_rows=rows, block_rows=block_rows,
                  masked=masked)

    if weight is None:
        kernel = functools.partial(_l1_sum_kernel, **common)
    else:
        w2, _ = _flatten_to_lanes(weight)
        args.append(w2)
        kernel = functools.partial(_l1_sum_w_kernel, **common)

    in_spec = pl.BlockSpec((block_rows, LANE), lambda j: (j, 0))
    out = pl.pallas_call(
        kernel,
        out_shape=jax.ShapeDtypeStruct((1, 1), jnp.float32),
        grid_spec=pltpu.PrefetchScalarGridSpec(
            num_scalar_prefetch=0,
            grid=(nblocks,),
            in_specs=[in_spec] * len(args),
            out_specs=pl.BlockSpec((1, 1), lambda j: (0, 0)),
            scratch_shapes=[pltpu.VMEM((ACC_SUBLANE, LANE), jnp.float32)],
        ),
        compiler_params=pltpu.CompilerParams(
            dimension_semantics=("arbitrary",),
            vmem_limit_bytes=_VMEM_LIMIT_BYTES),
    )(*args)
    return out[0, 0]


def _l1_elementwise(pred, target, weight, loss_weight,
                    block_bytes=_TARGET_BLOCK_BYTES):
    """Returns loss_weight * |pred - target| * weight, same shape as pred."""
    shape = pred.shape
    total = pred.size
    pred2, rows = _flatten_to_lanes(pred)
    tgt2, _ = _flatten_to_lanes(target)
    args = [pred2, tgt2]

    if weight is None:
        kernel = functools.partial(_l1_elem_kernel, loss_weight=loss_weight)
    else:
        w2, _ = _flatten_to_lanes(weight)
        args.append(w2)
        kernel = functools.partial(_l1_elem_w_kernel, loss_weight=loss_weight)

    block_rows = _pick_block_rows(rows, pred.dtype.itemsize, block_bytes)
    nblocks = pl.cdiv(rows, block_rows)
    spec = pl.BlockSpec((block_rows, LANE), lambda i: (i, 0))

    out = pl.pallas_call(
        kernel,
        out_shape=jax.ShapeDtypeStruct((rows, LANE), pred.dtype),
        grid_spec=pltpu.PrefetchScalarGridSpec(
            num_scalar_prefetch=0,
            grid=(nblocks,),
            in_specs=[spec] * len(args),
            out_specs=spec,     # ragged tail: Pallas drops OOB output writes
        ),
        compiler_params=pltpu.CompilerParams(
            dimension_semantics=("parallel",),
            vmem_limit_bytes=_VMEM_LIMIT_BYTES),
    )(*args)

    if rows * LANE == total:          # common aligned case: free reshape only
        return out.reshape(shape)
    return out.reshape(-1)[:total].reshape(shape)


class L1Loss:
    """L1 (MAE) loss, Pallas TPU implementation (basicsr L1Loss semantics)."""

    def __init__(self, loss_weight=1.0, reduction='mean'):
        if reduction not in ['none', 'mean', 'sum']:
            raise ValueError(f'Unsupported reduction mode: {reduction}. '
                             f"Supported ones are: ['none', 'mean', 'sum']")
        self.loss_weight = float(loss_weight)
        self.reduction = reduction

    def __call__(self, pred, target, weight=None, **kwargs):
        if weight is not None and weight.shape != pred.shape:
            # TODO(synk): stream broadcastable weights via their own BlockSpec
            # instead of materializing a full-size copy.
            weight = jnp.broadcast_to(weight, pred.shape)

        if self.reduction == 'none':
            return _l1_elementwise(pred, target, weight, self.loss_weight)

        if self.reduction == 'mean':
            scale = self.loss_weight / float(pred.size)
        else:  # 'sum'
            scale = self.loss_weight
        return _l1_reduce(pred, target, weight, scale)


# ------------------------------ main ---------------------------------------- #

if __name__ == "__main__":
    key = jax.random.PRNGKey(0)
    k1, k2, k3 = jax.random.split(key, 3)

    N, C, H, W = 2, 4, 16, 16
    pred = jax.random.normal(k1, (N, C, H, W), dtype=jnp.float32)
    target = jax.random.normal(k2, (N, C, H, W), dtype=jnp.float32)
    weight = jax.random.uniform(k3, (N, C, H, W), dtype=jnp.float32)

    # default case (mean, no weight) — fully fused scale in the kernel epilogue
    out_mean = jax.block_until_ready(
        L1Loss(loss_weight=1.0, reduction='mean')(pred, target))

    # weighted + sum (loss_weight folded into kernel epilogue)
    out_sum = jax.block_until_ready(
        L1Loss(loss_weight=0.5, reduction='sum')(pred, target, weight))

    # elementwise (reduction='none'), loss_weight fused in-kernel
    out_none = jax.block_until_ready(
        L1Loss(loss_weight=2.0, reduction='none')(pred, target, weight))

    # reference checks against plain JAX
    ref_mean = jnp.mean(jnp.abs(pred - target))
    ref_sum = 0.5 * jnp.sum(jnp.abs(pred - target) * weight)
    ref_none = 2.0 * jnp.abs(pred - target) * weight
    assert jnp.allclose(out_mean, ref_mean, rtol=1e-5, atol=1e-5)
    assert jnp.allclose(out_sum, ref_sum, rtol=1e-5, atol=1e-5)
    assert jnp.allclose(out_none, ref_none, rtol=1e-5, atol=1e-5)

    # non-lane-aligned shape: exercises the tail pad + in-kernel row mask
    N2, C2, H2, W2 = 2, 3, 7, 7
    p2 = jax.random.normal(k1, (N2, C2, H2, W2), dtype=jnp.float32)
    t2 = jax.random.normal(k2, (N2, C2, H2, W2), dtype=jnp.float32)
    out_mean2 = jax.block_until_ready(
        L1Loss(loss_weight=1.0, reduction='mean')(p2, t2))
    out_none2 = jax.block_until_ready(
        L1Loss(loss_weight=1.0, reduction='none')(p2, t2))
    assert jnp.allclose(out_mean2, jnp.mean(jnp.abs(p2 - t2)), rtol=1e-5, atol=1e-5)
    assert jnp.allclose(out_none2, jnp.abs(p2 - t2), rtol=1e-5, atol=1e-5)

    # bf16 inputs: exercises the (16,128) sublane-packing path, f32 accumulate
    pb = pred.astype(jnp.bfloat16)
    tb = target.astype(jnp.bfloat16)
    out_mean_bf16 = jax.block_until_ready(
        L1Loss(loss_weight=1.0, reduction='mean')(pb, tb))
    ref_mean_bf16 = jnp.mean(jnp.abs(pb - tb).astype(jnp.float32))
    assert jnp.allclose(out_mean_bf16, ref_mean_bf16, rtol=1e-2, atol=1e-2)

    # multi-block grid + ragged last block + tail pad (tiny block size forces
    # grid > 1 while keeping the test shape small)
    N3, C3, H3, W3 = 2, 4, 33, 33
    p3 = jax.random.normal(k1, (N3, C3, H3, W3), dtype=jnp.float32)
    t3 = jax.random.normal(k2, (N3, C3, H3, W3), dtype=jnp.float32)
    out_mean3 = jax.block_until_ready(
        _l1_reduce(p3, t3, None, 1.0 / p3.size, block_bytes=32 * 1024))
    out_none3 = jax.block_until_ready(
        _l1_elementwise(p3, t3, None, 1.0, block_bytes=32 * 1024))
    assert jnp.allclose(out_mean3, jnp.mean(jnp.abs(p3 - t3)), rtol=1e-5, atol=1e-5)
    assert jnp.allclose(out_none3, jnp.abs(p3 - t3), rtol=1e-5, atol=1e-5)

    print("KERNEL_OK")
</pallas_src>

<mosaic_0001>
module attributes {stable_mosaic.version = 11 : i64} {
  func.func @_l1_sum_kernel(%arg0: i32, %arg1: memref<16x128xf32, #tpu.memory_space<vmem>>, %arg2: memref<16x128xf32, #tpu.memory_space<vmem>>, %arg3: memref<1x1xf32, #tpu.memory_space<vmem>>, %arg4: memref<8x128xf32, #tpu.memory_space<vmem>>) attributes {dimension_semantics = [#tpu.dimension_semantics<arbitrary>], iteration_bounds = array<i64: 1>, scalar_prefetch = 0 : i64, scratch_operands = 1 : i64, tpu.core_type = #tpu.core_type<tc>, window_params = [{transform_indices = @transform_0, window_bounds = array<i64: 16, 128>}, {transform_indices = @transform_1, window_bounds = array<i64: 16, 128>}, {pipeline_mode = #tpu.pipeline_mode<synchronous>, transform_indices = @transform_2, window_bounds = array<i64: 1, 1>}]} {
    %c0_i32 = arith.constant 0 : i32
    %0 = arith.cmpi eq, %arg0, %c0_i32 : i32
    %1 = arith.extui %0 : i1 to i32
    %c0_i32_0 = arith.constant 0 : i32
    %2 = arith.cmpi ne, %1, %c0_i32_0 : i32
    scf.if %2 {
      %cst_10 = arith.constant 0.000000e+00 : f32
      %15 = vector.broadcast %cst_10 : f32 to vector<8x128xf32>
      %c0_11 = arith.constant 0 : index
      %c0_12 = arith.constant 0 : index
      %16 = vector.load %arg4[%c0_11, %c0_12] : memref<8x128xf32, #tpu.memory_space<vmem>>, vector<8x128xf32>
      tpu.vector_store %arg4[%c0_11, %c0_12], %15 {strides = array<i32>} : memref<8x128xf32, #tpu.memory_space<vmem>>, vector<8x128xf32>,
      %cst_13 = arith.constant 0.000000e+00 : f32
      %17 = vector.broadcast %cst_13 : f32 to vector<1x1xf32>
      %c0_14 = arith.constant 0 : index
      %c0_15 = arith.constant 0 : index
      %18 = vector.load %arg3[%c0_14, %c0_15] : memref<1x1xf32, #tpu.memory_space<vmem>>, vector<1x1xf32>
      tpu.vector_store %arg3[%c0_14, %c0_15], %17 {strides = array<i32>} : memref<1x1xf32, #tpu.memory_space<vmem>>, vector<1x1xf32>,
    } else {
    }
    %c0 = arith.constant 0 : index
    %c0_1 = arith.constant 0 : index
    %3 = vector.load %arg1[%c0, %c0_1] : memref<16x128xf32, #tpu.memory_space<vmem>>, vector<16x128xf32>
    %c0_2 = arith.constant 0 : index
    %c0_3 = arith.constant 0 : index
    %4 = vector.load %arg2[%c0_2, %c0_3] : memref<16x128xf32, #tpu.memory_space<vmem>>, vector<16x128xf32>
    %5 = arith.subf %3, %4 : vector<16x128xf32>
    %6 = math.absf %5 : vector<16x128xf32>
    %c0_4 = arith.constant 0 : index
    %c0_5 = arith.constant 0 : index
    %7 = vector.load %arg4[%c0_4, %c0_5] : memref<8x128xf32, #tpu.memory_space<vmem>>, vector<8x128xf32>
    %8 = vector.shape_cast %6 : vector<16x128xf32> to vector<2x8x128xf32>
    %cst = arith.constant dense<0.000000e+00> : vector<8x128xf32>
    %9 = vector.multi_reduction <add>, %8, %cst [0] : vector<2x8x128xf32> to vector<8x128xf32>
    %10 = arith.addf %7, %9 : vector<8x128xf32>
    %c0_6 = arith.constant 0 : index
    %c0_7 = arith.constant 0 : index
    %11 = vector.load %arg4[%c0_6, %c0_7] : memref<8x128xf32, #tpu.memory_space<vmem>>, vector<8x128xf32>
    tpu.vector_store %arg4[%c0_6, %c0_7], %10 {strides = array<i32>} : memref<8x128xf32, #tpu.memory_space<vmem>>, vector<8x128xf32>,
    %c0_i32_8 = arith.constant 0 : i32
    %12 = arith.cmpi eq, %arg0, %c0_i32_8 : i32
    %13 = arith.extui %12 : i1 to i32
    %c0_i32_9 = arith.constant 0 : i32
    %14 = arith.cmpi ne, %13, %c0_i32_9 : i32
    scf.if %14 {
      %c0_10 = arith.constant 0 : index
      %c0_11 = arith.constant 0 : index
      %15 = vector.load %arg4[%c0_10, %c0_11] : memref<8x128xf32, #tpu.memory_space<vmem>>, vector<8x128xf32>
      %cst_12 = arith.constant dense<0.000000e+00> : vector<8xf32>
      %16 = vector.multi_reduction <add>, %15, %cst_12 [1] : vector<8x128xf32> to vector<8xf32>
      %17 = vector.shape_cast %16 : vector<8xf32> to vector<8x1xf32>
      %cst_13 = arith.constant dense<0.000000e+00> : vector<1xf32>
      %18 = vector.multi_reduction <add>, %17, %cst_13 [0] : vector<8x1xf32> to vector<1xf32>
      %19 = vector.shape_cast %18 : vector<1xf32> to vector<1x1xf32>
      %cst_14 = arith.constant 4.8828125E-4 : f32
      %20 = vector.broadcast %cst_14 : f32 to vector<1x1xf32>
      %21 = arith.mulf %19, %20 : vector<1x1xf32>
      %c0_15 = arith.constant 0 : index
      %c0_16 = arith.constant 0 : index
      %22 = vector.load %arg3[%c0_15, %c0_16] : memref<1x1xf32, #tpu.memory_space<vmem>>, vector<1x1xf32>
      tpu.vector_store %arg3[%c0_15, %c0_16], %21 {strides = array<i32>} : memref<1x1xf32, #tpu.memory_space<vmem>>, vector<1x1xf32>,
    } else {
    }
    return
  }
  func.func @transform_0(%arg0: i32) -> (i32, i32) {
    %c0_i32 = arith.constant 0 : i32
    %c0_i32_0 = arith.constant 0 : i32
    return %arg0, %c0_i32 : i32, i32
  }
  func.func @transform_1(%arg0: i32) -> (i32, i32) {
    %c0_i32 = arith.constant 0 : i32
    %c0_i32_0 = arith.constant 0 : i32
    return %arg0, %c0_i32 : i32, i32
  }
  func.func @transform_2(%arg0: i32) -> (i32, i32) {
    %c0_i32 = arith.constant 0 : i32
    %c0_i32_0 = arith.constant 0 : i32
    %c0_i32_1 = arith.constant 0 : i32
    return %c0_i32, %c0_i32_0 : i32, i32
  }
}

</mosaic_0001>

<llo_original>
// kernel: tpu_custom_call.1
$region0: #{tpu_custom_call.1}
  #allocation0 [shape = 'u32[]', space=smem, size = 0x4, offset = 0x4, fixed_abs, tag = 'smem constant byte address 0x4 - core index']
  #allocation1 [shape = 'u32[144,128]{1,0:T(1,128)}', space=vmem, size = 0x12000, scoped, tag = 'internal scratch']
  #allocation2 [shape = 'f32[8,128]{1,0:T(8,128)}', space=vmem, size = 0x1000, scoped, tag = 'scratch operand']
  %s0 = inlined_call_operand.hbm [shape: f32[16,128], index: 0, kind: input, shape index: {}]
  %s1 = inlined_call_operand.hbm [shape: f32[16,128], index: 1, kind: input, shape index: {}]
  %s2 = inlined_call_operand.hbm [shape: f32[1,1], index: 2, kind: output, shape index: {}]
  %s3 = sld [smem:[#allocation0]]
  $region34: #{tpu_custom_call.1} parent=0
    _
  %s5 = ssub.s32 1, %s3
  %s6 = scalar_select 0, %s5, %s3
  $region1: #{tpu_custom_call.1} parent=0
    #allocation3 [shape = 'u8[8192]{0}', space=vmem, size = 0x2000, scoped, tag = 'input window, operand 0, single buffered']
    #allocation4 [shape = 's32[1]{0}', space=sflag, size = 0x4, scoped, tag = 'scoped memory for tpu_custom_call.1']
    #allocation5 [shape = 's32[1]{0}', space=sflag, size = 0x4, scoped, tag = 'scoped memory for tpu_custom_call.1']
    #allocation6 [shape = 'u8[8192]{0}', space=vmem, size = 0x2000, scoped, tag = 'input window, operand 1, single buffered']
    #allocation7 [shape = 's32[1]{0}', space=sflag, size = 0x4, scoped, tag = 'scoped memory for tpu_custom_call.1']
    #allocation8 [shape = 'u8[512]{0}', space=vmem, size = 0x400, scoped, tag = 'output window, operand 0, single buffered']
    %7 = vsyncpa [#allocation4], 0
    %8 = vsyncpa [#allocation7], 0
    %9 = vsyncpa [#allocation5], 0
    // Predicated region
    $region2: #{tpu_custom_call.1} parent=1 // pred_check
      _
    $region3: #{tpu_custom_call.1} parent=1 // pred_check_branch
      %11 = sbr.rel (0) target = $region5
    $region4: #{tpu_custom_call.1} parent=1 // pred_region
      %s13 = ssub.s32 256, 256
      %14 = vsyncadd [#allocation4], %s13
      %s15 = sshll.u32 [#allocation3], 4
      %s16 = int_to_ptr.vmem [resolvable:$true] %s15
      %21 = dma.hbm_to_vmem [thread:$0]  %s0, 256, %s16, [#allocation4], 128, 128, 8
    $region5: #{tpu_custom_call.1} parent=1 // pred_fallthru
      _
    // Predicated region
    $region6: #{tpu_custom_call.1} parent=1 // pred_check
      _
    $region7: #{tpu_custom_call.1} parent=1 // pred_check_branch
      %23 = sbr.rel (0) target = $region9
    $region8: #{tpu_custom_call.1} parent=1 // pred_region
      %s25 = ssub.s32 256, 256
      %26 = vsyncadd [#allocation7], %s25
      %s27 = sshll.u32 [#allocation6], 4
      %s28 = int_to_ptr.vmem [resolvable:$true] %s27
      %33 = dma.hbm_to_vmem [thread:$0]  %s1, 256, %s28, [#allocation7], 128, 128, 8
    $region9: #{tpu_custom_call.1} parent=1 // pred_fallthru
      _
    // Predicated region
    $region10: #{tpu_custom_call.1} parent=1 // pred_check
      _
    $region11: #{tpu_custom_call.1} parent=1 // pred_check_branch
      %35 = sbr.rel (0) target = $region13
    $region12: #{tpu_custom_call.1} parent=1 // pred_region
      %36 = dma.done [#allocation4], 256
    $region13: #{tpu_custom_call.1} parent=1 // pred_fallthru
      _
    // Predicated region
    $region14: #{tpu_custom_call.1} parent=1 // pred_check
      _
    $region15: #{tpu_custom_call.1} parent=1 // pred_check_branch
      %38 = sbr.rel (0) target = $region17
    $region16: #{tpu_custom_call.1} parent=1 // pred_region
      %39 = dma.done [#allocation7], 256
    $region17: #{tpu_custom_call.1} parent=1 // pred_fallthru
      _
    %p40 = scmp.eq.s32.totalorder 0, 0
    // Predicated region
    $region18: #{tpu_custom_call.1} parent=1 // pred_check
      %p41 = pneg %p40
    $region19: #{tpu_custom_call.1} parent=1 // pred_check_branch
      %43 = sbr.rel (%p41) target = $region21
    $region20: #{tpu_custom_call.1} parent=1 // pred_region
      %44 = vst [vmem:[#allocation2] sm:$0xff] 0.0
      %vm45 = vcmask 0
      %46 = vst.msk [vmem:[#allocation8] sm:$0x1] %vm45, 0.0
    $region21: #{tpu_custom_call.1} parent=1 // pred_fallthru
      _
    %v47 = vld [vmem:[#allocation3] sm:$0xff]
    %v48 = vld [vmem:[#allocation3 + $0x8] sm:$0xff]
    %v49 = vld [vmem:[#allocation6] sm:$0xff]
    %v50 = vld [vmem:[#allocation6 + $0x8] sm:$0xff]
    %v51 = vsub.f32 %v47, %v49
    %v52 = vsub.f32 %v48, %v50
    %v53 = vand.u32 2147483647, %v51
    %v54 = vand.u32 2147483647, %v52
    %v55 = vld [vmem:[#allocation2] sm:$0xff]
    %v56 = vadd.f32 %v53, %v54
    %v57 = vadd.f32 %v55, %v56
    %58 = vst [vmem:[#allocation2] sm:$0xff] %v57
    // Predicated region
    $region22: #{tpu_custom_call.1} parent=1 // pred_check
      %p59 = pneg %p40
    $region23: #{tpu_custom_call.1} parent=1 // pred_check_branch
      %61 = sbr.rel (%p59) target = $region25
    $region24: #{tpu_custom_call.1} parent=1 // pred_region
      %v62 = vld [vmem:[#allocation2] sm:$0xff]
      %63 = vadd.xlane.f32.xlu0 %v62
      %v64 = vpop.xlane.xlu0 %63
      %v65 = vrot.slane %v64, 4
      %v66 = vadd.f32 %v64, %v65
      %v67 = vrot.slane %v66, 2
      %v68 = vadd.f32 %v66, %v67
      %v69 = vrot.slane %v68, 1
      %v70 = vadd.f32 %v68, %v69
      %v71 = vmul.f32 %v70, 0.00048828125
      %vm72 = vcmask 0
      %73 = vst.msk [vmem:[#allocation8] sm:$0x1] %vm72, %v71
    $region25: #{tpu_custom_call.1} parent=1 // pred_fallthru
      _
    // Predicated region
    $region26: #{tpu_custom_call.1} parent=1 // pred_check
      _
    $region27: #{tpu_custom_call.1} parent=1 // pred_check_branch
      %75 = sbr.rel (0) target = $region29
    $region28: #{tpu_custom_call.1} parent=1 // pred_region
      %s77 = ssub.s32 16, 16
      %78 = vsyncadd [#allocation5], %s77
      %s80 = sshll.u32 [#allocation8], 4
      %s81 = int_to_ptr.vmem [resolvable:$true] %s80
      %83 = dma.vmem_to_hbm [thread:$0]  %s81, 16, %s2, [#allocation5]
    $region29: #{tpu_custom_call.1} parent=1 // pred_fallthru
      _
    // Predicated region
    $region30: #{tpu_custom_call.1} parent=1 // pred_check
      _
    $region31: #{tpu_custom_call.1} parent=1 // pred_check_branch
      %85 = sbr.rel (0) target = $region33
    $region32: #{tpu_custom_call.1} parent=1 // pred_region
      %86 = dma.done [#allocation5], 16
    $region33: #{tpu_custom_call.1} parent=1 // pred_fallthru
      _
    %87 = vsyncpa [#allocation4], 1
    %88 = vsyncpa [#allocation7], 1
    %89 = vsyncpa [#allocation5], 1

</llo_original>
